<compile_context>
chip_gen: v7x
topology: tpu7x:2x2x1
jax: 0.10.0
libtpu: 0.0.40
codegen_flags: <defaults>
</compile_context>

<pallas_src>
import functools
import math

import jax
import jax.numpy as jnp
from jax.experimental import pallas as pl
from jax.experimental.pallas import tpu as pltpu


def _pick_tile(n, target, multiple=8):
    """Largest tile <= target that divides n and is a multiple of `multiple`.
    Falls back to the full dimension (always a legal block shape)."""
    if n <= target:
        return n
    t = (target // multiple) * multiple
    while t >= multiple:
        if n % t == 0:
            return t
        t -= multiple
    return n


# ---------------------------------------------------------------------------
# Kernel 1: fused QKV projection — one MXU pass of x @ W_qkv (bf16 operands,
# f32 accumulation), outputs written as bf16 to halve HBM traffic.
# ---------------------------------------------------------------------------
def _qkv_kernel(x_ref, w_ref, q_ref, k_ref, v_ref):
    x = x_ref[...].astype(jnp.bfloat16)               # (TM, d)
    w = w_ref[...].astype(jnp.bfloat16)               # (d, 3d), resident
    qkv = jnp.dot(x, w, preferred_element_type=jnp.float32)   # (TM, 3d)
    d = q_ref.shape[-1]
    q_ref[...] = qkv[:, 0 * d:1 * d].astype(q_ref.dtype)
    k_ref[...] = qkv[:, 1 * d:2 * d].astype(k_ref.dtype)
    v_ref[...] = qkv[:, 2 * d:3 * d].astype(v_ref.dtype)


# ---------------------------------------------------------------------------
# Kernel 2: flash attention — online softmax over KV blocks, no (T, T)
# materialization, no explicit k.T (dot_general contracts on dim 1 of k).
# Softmax statistics kept in f32; MXU operands in bf16.
# ---------------------------------------------------------------------------
def _flash_kernel(q_ref, k_ref, v_ref, o_ref, m_sc, l_sc, acc_sc, *, scale):
    ki = pl.program_id(2)

    @pl.when(ki == 0)
    def _():
        m_sc[...] = jnp.full_like(m_sc, -jnp.inf)
        l_sc[...] = jnp.zeros_like(l_sc)
        acc_sc[...] = jnp.zeros_like(acc_sc)

    q = q_ref[...]                                     # (TQ, d) bf16
    k = k_ref[...]                                     # (TK, d) bf16
    s = jax.lax.dot_general(
        q, k, dimension_numbers=(((1,), (1,)), ((), ())),
        preferred_element_type=jnp.float32) * scale    # (TQ, TK) f32

    m_prev = m_sc[...]
    m_new = jnp.maximum(m_prev, jnp.max(s, axis=-1, keepdims=True))
    alpha = jnp.exp(m_prev - m_new)
    p = jnp.exp(s - m_new)                             # (TQ, TK) f32
    l_sc[...] = alpha * l_sc[...] + jnp.sum(p, axis=-1, keepdims=True)
    acc_sc[...] = alpha * acc_sc[...] + jnp.dot(
        p.astype(v_ref.dtype), v_ref[...], preferred_element_type=jnp.float32)
    m_sc[...] = m_new

    @pl.when(ki == pl.num_programs(2) - 1)
    def _():
        inv_l = pl.reciprocal(l_sc[...], approx=True)  # EUP slot, essentially free
        o_ref[...] = (acc_sc[...] * inv_l).astype(o_ref.dtype)


def self_attention(x, w_attn, *, row_tile=256, q_tile=256, kv_tile=256):
    """x: (B, T, d) float32.  w_attn: (3d, d) — PyTorch nn.Linear(d, 3d) weight."""
    B, T, d = x.shape
    assert w_attn.shape == (3 * d, d)

    # nn.Linear computes x @ W.T → fused (d, 3d) weight so qkv = x @ w_qkv.
    w_qkv = w_attn.T.astype(jnp.bfloat16)              # (d, 3d)

    # ---- fused QKV projection over a row-dense (B*T, d) slab ----
    BT = B * T
    TM = _pick_tile(BT, row_tile)
    x2 = x.reshape(BT, d)
    qkv_out_spec = pl.BlockSpec((TM, d), lambda i: (i, 0))

    q2, k2, v2 = pl.pallas_call(
        _qkv_kernel,
        out_shape=(jax.ShapeDtypeStruct((BT, d), jnp.bfloat16),) * 3,
        grid_spec=pltpu.PrefetchScalarGridSpec(
            num_scalar_prefetch=0,
            grid=(BT // TM,),
            in_specs=(
                pl.BlockSpec((TM, d), lambda i: (i, 0)),
                pl.BlockSpec((d, 3 * d), lambda i: (0, 0)),   # weight stays resident
            ),
            out_specs=(qkv_out_spec, qkv_out_spec, qkv_out_spec),
        ),
        compiler_params=pltpu.CompilerParams(
            dimension_semantics=("parallel",),
            vmem_limit_bytes=48 * 1024 * 1024),
    )(x2, w_qkv)

    q = q2.reshape(B, T, d)
    k = k2.reshape(B, T, d)
    v = v2.reshape(B, T, d)

    # ---- flash attention: grid = (batch, query-blocks, kv-blocks) ----
    TQ = _pick_tile(T, q_tile)
    TK = _pick_tile(T, kv_tile)
    scale = 1.0 / math.sqrt(d)
    kernel = functools.partial(_flash_kernel, scale=scale)

    return pl.pallas_call(
        kernel,
        out_shape=jax.ShapeDtypeStruct((B, T, d), x.dtype),
        grid_spec=pltpu.PrefetchScalarGridSpec(
            num_scalar_prefetch=0,
            grid=(B, T // TQ, T // TK),
            in_specs=(
                pl.BlockSpec((None, TQ, d), lambda b, qi, ki: (b, qi, 0)),
                pl.BlockSpec((None, TK, d), lambda b, qi, ki: (b, ki, 0)),
                pl.BlockSpec((None, TK, d), lambda b, qi, ki: (b, ki, 0)),
            ),
            out_specs=pl.BlockSpec((None, TQ, d), lambda b, qi, ki: (b, qi, 0)),
            scratch_shapes=[
                pltpu.VMEM((TQ, 1), jnp.float32),      # running max m
                pltpu.VMEM((TQ, 1), jnp.float32),      # running sum l
                pltpu.VMEM((TQ, d), jnp.float32),      # output accumulator
            ]),
        compiler_params=pltpu.CompilerParams(
            dimension_semantics=("parallel", "parallel", "arbitrary"),
            vmem_limit_bytes=48 * 1024 * 1024),
    )(q, k, v)


def _reference(x, w_attn):
    d = x.shape[-1]
    qkv = jnp.einsum("btd,ed->bte", x, w_attn)           # Linear: x @ W.T
    q, k, v = qkv[..., :d], qkv[..., d:2 * d], qkv[..., 2 * d:]
    att = jnp.einsum("bqd,bkd->bqk", q, k) * (1.0 / math.sqrt(d))
    att = jax.nn.softmax(att, axis=-1)
    return jnp.einsum("bqk,bkd->bqd", att, v)


if __name__ == "__main__":
    B, T, d = 2, 8, 32
    key = jax.random.PRNGKey(0)
    kx, kw = jax.random.split(key)

    x = jax.random.normal(kx, (B, T, d), dtype=jnp.float32)
    # nn.Linear(d, 3d, bias=False) default init: U(-1/sqrt(d), 1/sqrt(d)), shape (3d, d)
    bound = 1.0 / math.sqrt(d)
    w_attn = jax.random.uniform(kw, (3 * d, d), dtype=jnp.float32,
                                minval=-bound, maxval=bound)

    y = self_attention(x, w_attn)
    jax.block_until_ready(y)

    y_ref = _reference(x, w_attn)
    assert y.shape == (B, T, d)
    # bf16 MXU operands + approx reciprocal → loosen tolerance vs the f32 reference.
    max_err = float(jnp.max(jnp.abs(y - y_ref)))
    assert jnp.allclose(y, y_ref, atol=2e-2, rtol=2e-2), \
        f"mismatch vs reference (max abs err {max_err})"

    print("KERNEL_OK")
</pallas_src>

<mosaic_0001>
module attributes {stable_mosaic.version = 11 : i64} {
  func.func @_qkv_kernel(%arg0: i32, %arg1: memref<16x32xf32, #tpu.memory_space<vmem>>, %arg2: memref<32x96xbf16, #tpu.memory_space<vmem>>, %arg3: memref<16x32xbf16, #tpu.memory_space<vmem>>, %arg4: memref<16x32xbf16, #tpu.memory_space<vmem>>, %arg5: memref<16x32xbf16, #tpu.memory_space<vmem>>) attributes {dimension_semantics = [#tpu.dimension_semantics<parallel>], iteration_bounds = array<i64: 1>, scalar_prefetch = 0 : i64, scratch_operands = 0 : i64, tpu.core_type = #tpu.core_type<tc>, window_params = [{transform_indices = @transform_0, window_bounds = array<i64: 16, 32>}, {pipeline_mode = #tpu.pipeline_mode<synchronous>, transform_indices = @transform_1, window_bounds = array<i64: 32, 96>}, {transform_indices = @transform_2, window_bounds = array<i64: 16, 32>}, {transform_indices = @transform_3, window_bounds = array<i64: 16, 32>}, {transform_indices = @transform_4, window_bounds = array<i64: 16, 32>}]} {
    %c0 = arith.constant 0 : index
    %c0_0 = arith.constant 0 : index
    %0 = vector.load %arg1[%c0, %c0_0] : memref<16x32xf32, #tpu.memory_space<vmem>>, vector<16x32xf32>
    %1 = arith.truncf %0 : vector<16x32xf32> to vector<16x32xbf16>
    %c0_1 = arith.constant 0 : index
    %c0_2 = arith.constant 0 : index
    %2 = vector.load %arg2[%c0_1, %c0_2] : memref<32x96xbf16, #tpu.memory_space<vmem>>, vector<32x96xbf16>
    %cst = arith.constant dense<0.000000e+00> : vector<16x96xf32>
    %3 = tpu.matmul %1, %2, %cst {dimension_numbers = #tpu.dot_dimension_numbers<[1], [0], [0], [1], [0, 0, 1, 1], [], []>} : vector<16x32xbf16>, vector<32x96xbf16>, vector<16x96xf32> -> vector<16x96xf32>
    %4 = vector.extract_strided_slice %3 {offsets = [0, 0], sizes = [16, 32], strides = [1, 1]} : vector<16x96xf32> to vector<16x32xf32>
    %5 = arith.truncf %4 : vector<16x32xf32> to vector<16x32xbf16>
    %c0_3 = arith.constant 0 : index
    %c0_4 = arith.constant 0 : index
    %6 = vector.load %arg3[%c0_3, %c0_4] : memref<16x32xbf16, #tpu.memory_space<vmem>>, vector<16x32xbf16>
    tpu.vector_store %arg3[%c0_3, %c0_4], %5 {strides = array<i32>} : memref<16x32xbf16, #tpu.memory_space<vmem>>, vector<16x32xbf16>,
    %7 = vector.extract_strided_slice %3 {offsets = [0, 32], sizes = [16, 32], strides = [1, 1]} : vector<16x96xf32> to vector<16x32xf32>
    %8 = arith.truncf %7 : vector<16x32xf32> to vector<16x32xbf16>
    %c0_5 = arith.constant 0 : index
    %c0_6 = arith.constant 0 : index
    %9 = vector.load %arg4[%c0_5, %c0_6] : memref<16x32xbf16, #tpu.memory_space<vmem>>, vector<16x32xbf16>
    tpu.vector_store %arg4[%c0_5, %c0_6], %8 {strides = array<i32>} : memref<16x32xbf16, #tpu.memory_space<vmem>>, vector<16x32xbf16>,
    %10 = vector.extract_strided_slice %3 {offsets = [0, 64], sizes = [16, 32], strides = [1, 1]} : vector<16x96xf32> to vector<16x32xf32>
    %11 = arith.truncf %10 : vector<16x32xf32> to vector<16x32xbf16>
    %c0_7 = arith.constant 0 : index
    %c0_8 = arith.constant 0 : index
    %12 = vector.load %arg5[%c0_7, %c0_8] : memref<16x32xbf16, #tpu.memory_space<vmem>>, vector<16x32xbf16>
    tpu.vector_store %arg5[%c0_7, %c0_8], %11 {strides = array<i32>} : memref<16x32xbf16, #tpu.memory_space<vmem>>, vector<16x32xbf16>,
    return
  }
  func.func @transform_0(%arg0: i32) -> (i32, i32) {
    %c0_i32 = arith.constant 0 : i32
    %c0_i32_0 = arith.constant 0 : i32
    return %arg0, %c0_i32 : i32, i32
  }
  func.func @transform_1(%arg0: i32) -> (i32, i32) {
    %c0_i32 = arith.constant 0 : i32
    %c0_i32_0 = arith.constant 0 : i32
    %c0_i32_1 = arith.constant 0 : i32
    return %c0_i32, %c0_i32_0 : i32, i32
  }
  func.func @transform_2(%arg0: i32) -> (i32, i32) {
    %c0_i32 = arith.constant 0 : i32
    %c0_i32_0 = arith.constant 0 : i32
    return %arg0, %c0_i32 : i32, i32
  }
  func.func @transform_3(%arg0: i32) -> (i32, i32) {
    %c0_i32 = arith.constant 0 : i32
    %c0_i32_0 = arith.constant 0 : i32
    return %arg0, %c0_i32 : i32, i32
  }
  func.func @transform_4(%arg0: i32) -> (i32, i32) {
    %c0_i32 = arith.constant 0 : i32
    %c0_i32_0 = arith.constant 0 : i32
    return %arg0, %c0_i32 : i32, i32
  }
}

</mosaic_0001>

<llo_original>
// kernel: tpu_custom_call.1
$region0: #{tpu_custom_call.1}
  #allocation0 [shape = 'u32[]', space=smem, size = 0x4, offset = 0x4, fixed_abs, tag = 'smem constant byte address 0x4 - core index']
  #allocation1 [shape = 'u32[144,128]{1,0:T(1,128)}', space=vmem, size = 0x12000, scoped, tag = 'internal scratch']
  %s0 = inlined_call_operand.hbm [shape: f32[16,32], index: 0, kind: input, shape index: {}]
  %s1 = inlined_call_operand.hbm [shape: bf16[32,96], index: 1, kind: input, shape index: {}]
  %s2 = inlined_call_operand.hbm [shape: bf16[16,32], index: 2, kind: output, shape index: {0}]
  %s3 = inlined_call_operand.hbm [shape: bf16[16,32], index: 3, kind: output, shape index: {1}]
  %s4 = inlined_call_operand.hbm [shape: bf16[16,32], index: 4, kind: output, shape index: {2}]
  %5 = xla_tuple %s2, %s3, %s4
  %s6 = sld [smem:[#allocation0]]
  $region42: #{tpu_custom_call.1} parent=0
    _
  %s8 = ssub.s32 1, %s6
  %s9 = scalar_select 0, %s8, %s6
  $region1: #{tpu_custom_call.1} parent=0
    #allocation2 [shape = 'u8[8192]{0}', space=vmem, size = 0x2000, scoped, tag = 'input window, operand 0, single buffered']
    #allocation3 [shape = 's32[1]{0}', space=sflag, size = 0x4, scoped, tag = 'scoped memory for tpu_custom_call.1']
    #allocation4 [shape = 's32[1]{0}', space=sflag, size = 0x4, scoped, tag = 'scoped memory for tpu_custom_call.1']
    #allocation5 [shape = 'u8[8192]{0}', space=vmem, size = 0x2000, scoped, tag = 'input window, operand 1, single buffered']
    #allocation6 [shape = 's32[1]{0}', space=sflag, size = 0x4, scoped, tag = 'scoped memory for tpu_custom_call.1']
    #allocation7 [shape = 'u8[4096]{0}', space=vmem, size = 0x1000, scoped, tag = 'output window, operand 0, single buffered']
    #allocation8 [shape = 'u8[4096]{0}', space=vmem, size = 0x1000, scoped, tag = 'output window, operand 1, single buffered']
    #allocation9 [shape = 's32[1]{0}', space=sflag, size = 0x4, scoped, tag = 'scoped memory for tpu_custom_call.1']
    #allocation10 [shape = 'u8[4096]{0}', space=vmem, size = 0x1000, scoped, tag = 'output window, operand 2, single buffered']
    %10 = vsyncpa [#allocation3], 0
    %11 = vsyncpa [#allocation6], 0
    %12 = vsyncpa [#allocation4], 0
    %13 = vsyncpa [#allocation9], 0
    // Predicated region
    $region2: #{tpu_custom_call.1} parent=1 // pred_check
      _
    $region3: #{tpu_custom_call.1} parent=1 // pred_check_branch
      %15 = sbr.rel (0) target = $region5
    $region4: #{tpu_custom_call.1} parent=1 // pred_region
      %s17 = ssub.s32 256, 256
      %18 = vsyncadd [#allocation3], %s17
      %s19 = sshll.u32 [#allocation2], 4
      %s20 = int_to_ptr.vmem [resolvable:$true] %s19
      %25 = dma.hbm_to_vmem [thread:$0]  %s0, 256, %s20, [#allocation3], 128, 128, 8
    $region5: #{tpu_custom_call.1} parent=1 // pred_fallthru
      _
    // Predicated region
    $region6: #{tpu_custom_call.1} parent=1 // pred_check
      _
    $region7: #{tpu_custom_call.1} parent=1 // pred_check_branch
      %27 = sbr.rel (0) target = $region9
    $region8: #{tpu_custom_call.1} parent=1 // pred_region
      %s29 = ssub.s32 256, 256
      %30 = vsyncadd [#allocation6], %s29
      %s31 = sshll.u32 [#allocation5], 4
      %s32 = int_to_ptr.vmem [resolvable:$true] %s31
      %37 = dma.hbm_to_vmem [thread:$0]  %s1, 256, %s32, [#allocation6], 64, 64, 4
    $region9: #{tpu_custom_call.1} parent=1 // pred_fallthru
      _
    // Predicated region
    $region10: #{tpu_custom_call.1} parent=1 // pred_check
      _
    $region11: #{tpu_custom_call.1} parent=1 // pred_check_branch
      %39 = sbr.rel (0) target = $region13
    $region12: #{tpu_custom_call.1} parent=1 // pred_region
      %40 = dma.done [#allocation3], 256
    $region13: #{tpu_custom_call.1} parent=1 // pred_fallthru
      _
    // Predicated region
    $region14: #{tpu_custom_call.1} parent=1 // pred_check
      _
    $region15: #{tpu_custom_call.1} parent=1 // pred_check_branch
      %42 = sbr.rel (0) target = $region17
    $region16: #{tpu_custom_call.1} parent=1 // pred_region
      %43 = dma.done [#allocation6], 256
    $region17: #{tpu_custom_call.1} parent=1 // pred_fallthru
      _
    %v45 = vld [vmem:[#allocation2] sm:$0xff]
    %v46 = vld [vmem:[#allocation2 + $0x8] sm:$0xff]
    %v47 = vpack.c.bf16 %v46, %v45
    %v48 = vld [vmem:[#allocation5] sm:$0xf]
    %v49 = vld [vmem:[#allocation5 + $0x4] sm:$0xf]
    %v50 = vld [vmem:[#allocation5 + $0x8] sm:$0xf]
    %v51 = vld [vmem:[#allocation5 + $0xc] sm:$0xf]
    %v56 = vunpack.c.l.b16 %v48
    %v57 = vunpack.c.l.b16 %v49
    %v58 = vunpack.c.l.b16 %v50
    %v59 = vunpack.c.l.b16 %v51
    %v60 = vpack.c.b16 %v57, %v56
    %v61 = vpack.c.b16 %v59, %v58
    %vm64 = vcmask 261120
    %v66 = vsel %vm64, %v47, 0
    %68 = vmatprep.subr.bf16.mxu0 0
    %69 = vmatpush1.bf16.msra.mxu0 %v60
    %70 = vmatprep.subr.bf16.mxu0 0
    %71 = vmatpush1.bf16.msra.mxu0 %v61
    %72 = vmatprep.subr.bf16.mxu0 0
    %73 = vmatpush1.bf16.msra.mxu0 0
    %74 = vmatprep.subr.bf16.mxu0 0
    %75 = vmatpush1.bf16.msra.mxu0 0
    %76 = vmatprep.subr.bf16.mxu0 0
    %77 = vmatpush1.bf16.msra.mxu0 0
    %78 = vmatprep.subr.bf16.mxu0 0
    %79 = vmatpush1.bf16.msra.mxu0 0
    %80 = vmatprep.subr.bf16.mxu0 0
    %81 = vmatpush1.bf16.msra.mxu0 0
    %82 = vmatprep.subr.bf16.mxu0 0
    %83 = vmatpush1.bf16.msra.mxu0 0
    %84 = vmatprep.subr.bf16.mxu0 0
    %85 = vmatpush1.bf16.msra.mxu0 0
    %86 = vmatprep.subr.bf16.mxu0 0
    %87 = vmatpush1.bf16.msra.mxu0 0
    %88 = vmatprep.subr.bf16.mxu0 0
    %89 = vmatpush1.bf16.msra.mxu0 0
    %90 = vmatprep.subr.bf16.mxu0 0
    %91 = vmatpush1.bf16.msra.mxu0 0
    %92 = vmatprep.subr.bf16.mxu0 0
    %93 = vmatpush1.bf16.msra.mxu0 0
    %94 = vmatprep.subr.bf16.mxu0 0
    %95 = vmatpush1.bf16.msra.mxu0 0
    %96 = vmatprep.subr.bf16.mxu0 0
    %97 = vmatpush1.bf16.msra.mxu0 0
    %98 = vmatprep.subr.bf16.mxu0 0
    %99 = vmatpush1.bf16.msra.mxu0 0
    %100 = vmatprep.mubr.bf16.mxu0 0
    %101 = vmatmul.mubr.bf16.gmra.mrb[0].mxu0 %v66
    %v102 = vpop.f32.mrb[0].mxu0
    %v103 = vadd.f32 0.0, %v102
    %v104 = vpop.f32.mrb[0].mxu0
    %v105 = vpop.f32.mrb[0].mxu0
    %v106 = vadd.f32 0.0, %v105
    %v107 = vpop.f32.mrb[0].mxu0
    %108 = vdwg.mxu0
    %v109 = vpack.c.bf16 %v106, %v103
    %v111 = vunpack.c.l.b16 %v109
    %v112 = vunpack.c.h.b16 %v109
    %v113 = vpack.c.b16 %v111, %v111
    %v114 = vpack.c.b16 %v112, %v112
    %vm117 = vcmask 257024
    %118 = vst.msk [vmem:[#allocation7] sm:$0xf] %vm117, %v113
    %119 = vst.msk [vmem:[#allocation7 + $0x4] sm:$0xf] %vm117, %v114
    %120 = vrot.lane.b32.xlu0 %v113, 96
    %v121 = vpop.permute.xlu0 %120
    %122 = vrot.lane.b32.xlu0 %v114, 96
    %v123 = vpop.permute.xlu0 %122
    %126 = vst.msk [vmem:[#allocation8] sm:$0xf] %vm117, %v121
    %127 = vst.msk [vmem:[#allocation8 + $0x4] sm:$0xf] %vm117, %v123
    %128 = vrot.lane.b32.xlu0 %v113, 64
    %v129 = vpop.permute.xlu0 %128
    %130 = vrot.lane.b32.xlu0 %v114, 64
    %v131 = vpop.permute.xlu0 %130
    %134 = vst.msk [vmem:[#allocation10] sm:$0xf] %vm117, %v129
    %135 = vst.msk [vmem:[#allocation10 + $0x4] sm:$0xf] %vm117, %v131
    // Predicated region
    $region18: #{tpu_custom_call.1} parent=1 // pred_check
      _
    $region19: #{tpu_custom_call.1} parent=1 // pred_check_branch
      %137 = sbr.rel (0) target = $region21
    $region20: #{tpu_custom_call.1} parent=1 // pred_region
      %s139 = ssub.s32 128, 128
      %140 = vsyncadd [#allocation4], %s139
      %s141 = sshll.u32 [#allocation7], 4
      %s142 = int_to_ptr.vmem [resolvable:$true] %s141
      %147 = dma.vmem_to_hbm [thread:$0]  %s142, 128, %s2, [#allocation4], 64, 64, 4
    $region21: #{tpu_custom_call.1} parent=1 // pred_fallthru
      _
    // Predicated region
    $region22: #{tpu_custom_call.1} parent=1 // pred_check
      _
    $region23: #{tpu_custom_call.1} parent=1 // pred_check_branch
      %149 = sbr.rel (0) target = $region25
    $region24: #{tpu_custom_call.1} parent=1 // pred_region
      %s151 = ssub.s32 128, 128
      %152 = vsyncadd [#allocation9], %s151
      %s153 = sshll.u32 [#allocation8], 4
      %s154 = int_to_ptr.vmem [resolvable:$true] %s153
      %159 = dma.vmem_to_hbm [thread:$0]  %s154, 128, %s3, [#allocation9], 64, 64, 4
    $region25: #{tpu_custom_call.1} parent=1 // pred_fallthru
      _
    // Predicated region
    $region26: #{tpu_custom_call.1} parent=1 // pred_check
      _
    $region27: #{tpu_custom_call.1} parent=1 // pred_check_branch
      %161 = sbr.rel (0) target = $region29
    $region28: #{tpu_custom_call.1} parent=1 // pred_region
      %s163 = ssub.s32 128, 128
      %164 = vsyncadd [#allocation9], %s163
      %s165 = sshll.u32 [#allocation10], 4
      %s166 = int_to_ptr.vmem [resolvable:$true] %s165
      %171 = dma.vmem_to_hbm [thread:$0]  %s166, 128, %s4, [#allocation9], 64, 64, 4
    $region29: #{tpu_custom_call.1} parent=1 // pred_fallthru
      _
    // Predicated region
    $region30: #{tpu_custom_call.1} parent=1 // pred_check
      _
    $region31: #{tpu_custom_call.1} parent=1 // pred_check_branch
      %173 = sbr.rel (0) target = $region33
    $region32: #{tpu_custom_call.1} parent=1 // pred_region
      %174 = dma.done [#allocation4], 128
    $region33: #{tpu_custom_call.1} parent=1 // pred_fallthru
      _
    // Predicated region
    $region34: #{tpu_custom_call.1} parent=1 // pred_check
      _
    $region35: #{tpu_custom_call.1} parent=1 // pred_check_branch
      %176 = sbr.rel (0) target = $region37
    $region36: #{tpu_custom_call.1} parent=1 // pred_region
      %177 = dma.done [#allocation9], 128
    $region37: #{tpu_custom_call.1} parent=1 // pred_fallthru
      _
    // Predicated region
    $region38: #{tpu_custom_call.1} parent=1 // pred_check
      _
    $region39: #{tpu_custom_call.1} parent=1 // pred_check_branch
      %179 = sbr.rel (0) target = $region41
    $region40: #{tpu_custom_call.1} parent=1 // pred_region
      %180 = dma.done [#allocation9], 128
    $region41: #{tpu_custom_call.1} parent=1 // pred_fallthru
      _
    %181 = vsyncpa [#allocation3], 1
    %182 = vsyncpa [#allocation6], 1
    %183 = vsyncpa [#allocation4], 1
    %184 = vsyncpa [#allocation9], 1

</llo_original>
